<compile_context>
chip_gen: v7x
topology: tpu7x:2x2x1
jax: 0.10.0
libtpu: 0.0.40
codegen_flags: <defaults>
</compile_context>

<pallas_src>
import jax
import jax.numpy as jnp
from jax import lax
from jax.experimental import pallas as pl
from jax.experimental.pallas import tpu as pltpu

STATE_SIZE = 2 + 4 * 3  # 14
H1, H2, H3, OUT = 64, 64, 32, 4
TB_MAX = 2048           # max batch tile on the lane axis; sweep 1024-2048


def _pick_tile(b, tb_max=TB_MAX):
    """Batch tile: multiple of 128, as large as possible, but >= 2 tiles so a
    v7x megacore can split the 'parallel' batch axis across both TCs."""
    half = -(-b // 2)                       # cdiv(b, 2)
    tb = ((half + 127) // 128) * 128        # round up to lane multiple
    return max(128, min(tb_max, tb))


def _mlp_kernel(x_ref,
                w1_ref, b1_ref,
                w2_ref, b2_ref,
                w3_ref, b3_ref,
                w4_ref, b4_ref,
                o_ref):
    # x block is batch-major [TB, STATE_SIZE] f32; cast to bf16 for the MXU.
    x = x_ref[...].astype(jnp.bfloat16)

    # Hoist bias reads once per grid step; [out, 1] f32 broadcasts along lanes.
    b1 = b1_ref[...]
    b2 = b2_ref[...]
    b3 = b3_ref[...]
    b4 = b4_ref[...]

    # layer 1 + ReLU:  W1 [64,14] (x) x [TB,14] contracted on the feature axis
    # -> feature-major [64, TB] straight out of the MXU (no explicit transpose).
    h = lax.dot_general(w1_ref[...], x,
                        dimension_numbers=(((1,), (1,)), ((), ())),
                        preferred_element_type=jnp.float32)
    h = jnp.maximum(h + b1, 0.0)

    # layer 2 + ReLU   (bf16 MXU operands, f32 accumulate / elementwise)
    h = jnp.dot(w2_ref[...], h.astype(jnp.bfloat16),
                preferred_element_type=jnp.float32)
    h = jnp.maximum(h + b2, 0.0)

    # layer 3 + ReLU
    h = jnp.dot(w3_ref[...], h.astype(jnp.bfloat16),
                preferred_element_type=jnp.float32)
    h = jnp.maximum(h + b3, 0.0)

    # layer 4 (no activation)
    h = jnp.dot(w4_ref[...], h.astype(jnp.bfloat16),
                preferred_element_type=jnp.float32)
    o_ref[...] = (h + b4).astype(o_ref.dtype)   # [OUT, TB] lane-dense store


def prepare_params(params):
    """One-time preprocessing: weights -> bf16 [out, in], biases -> f32 [out, 1]."""
    prepped = []
    for name in ("layer_1", "layer_2", "layer_3", "layer_4"):
        w, b = params[name]
        prepped.append(w.astype(jnp.bfloat16))
        prepped.append(b.reshape(-1, 1).astype(jnp.float32))
    return tuple(prepped)


def vf_approx_forward(x, prepped, *, tb=None, transpose_output=True):
    """x: [B, STATE_SIZE] f32; prepped: output of prepare_params.

    Returns [B, 4] f32 (module-native) or [4, B] if transpose_output=False.
    """
    B = x.shape[0]
    if tb is None:
        tb = _pick_tile(B)
    n_tiles = pl.cdiv(B, tb)   # ragged last tile handled by Pallas block masking

    # Weights/biases: full-array blocks, constant index_map -> stay VMEM
    # resident across grid steps (pipeline revisits the same block indices,
    # so no re-DMA).
    resident = lambda a: pl.BlockSpec(a.shape, lambda i: (0, 0))

    flops = 2 * B * (STATE_SIZE * H1 + H1 * H2 + H2 * H3 + H3 * OUT)
    bytes_accessed = (
        B * STATE_SIZE * 4            # f32 x in
        + B * OUT * 4                 # f32 out
        + 2 * (STATE_SIZE * H1 + H1 * H2 + H2 * H3 + H3 * OUT)  # bf16 weights
        + 4 * (H1 + H2 + H3 + OUT))   # f32 biases

    out_t = pl.pallas_call(
        _mlp_kernel,
        out_shape=jax.ShapeDtypeStruct((OUT, B), jnp.float32),
        grid=(n_tiles,),
        in_specs=[
            pl.BlockSpec((tb, STATE_SIZE), lambda i: (i, 0)),   # batch-major x
            resident(prepped[0]), resident(prepped[1]),
            resident(prepped[2]), resident(prepped[3]),
            resident(prepped[4]), resident(prepped[5]),
            resident(prepped[6]), resident(prepped[7]),
        ],
        out_specs=pl.BlockSpec((OUT, tb), lambda i: (0, i)),    # lane-dense store
        compiler_params=pltpu.CompilerParams(
            dimension_semantics=("parallel",)),
        cost_estimate=pl.CostEstimate(
            flops=flops, transcendentals=0, bytes_accessed=bytes_accessed),
    )(x, *prepped)

    return out_t.T if transpose_output else out_t


def init_params(key):
    """PyTorch-Linear-style init (uniform +/- 1/sqrt(fan_in)), native [out, in]."""
    dims = [(STATE_SIZE, H1), (H1, H2), (H2, H3), (H3, OUT)]
    names = ["layer_1", "layer_2", "layer_3", "layer_4"]
    params = {}
    for name, (fan_in, fan_out) in zip(names, dims):
        key, kw, kb = jax.random.split(key, 3)
        bound = 1.0 / jnp.sqrt(fan_in)
        w = jax.random.uniform(kw, (fan_out, fan_in), jnp.float32, -bound, bound)
        b = jax.random.uniform(kb, (fan_out,), jnp.float32, -bound, bound)
        params[name] = (w, b)
    return params


def reference_forward(x, params):
    """Batch-major reference mirroring the kernel's numerics (bf16 MXU operands,
    f32 accumulation and elementwise).  Note: vs a pure-f32 PyTorch
    VfApproxModel the kernel differs by ~1e-3 relative due to bf16 operands."""
    h = x.astype(jnp.bfloat16)
    for name in ["layer_1", "layer_2", "layer_3"]:
        w, b = params[name]
        h = jnp.dot(h, w.T.astype(jnp.bfloat16),
                    preferred_element_type=jnp.float32) + b
        h = jnp.maximum(h, 0.0).astype(jnp.bfloat16)
    w, b = params["layer_4"]
    return jnp.dot(h, w.T.astype(jnp.bfloat16),
                   preferred_element_type=jnp.float32) + b


if __name__ == "__main__":
    key = jax.random.PRNGKey(0)
    key, kx = jax.random.split(key)

    batch = 300   # exercises a 2-step grid (tb=256) with a ragged/masked last tile
    x = jax.random.normal(kx, (batch, STATE_SIZE), jnp.float32)
    params = init_params(key)
    prepped = prepare_params(params)   # one-time cast/reshape outside the hot path

    fwd = jax.jit(vf_approx_forward)
    out = jax.block_until_ready(fwd(x, prepped))

    ref = reference_forward(x, params)
    assert out.shape == (batch, OUT)
    assert jnp.allclose(out, ref, atol=2e-3, rtol=2e-3), (
        float(jnp.max(jnp.abs(out - ref))))

    print("KERNEL_OK")
</pallas_src>

<mosaic_0001>
module attributes {stable_mosaic.version = 11 : i64} {
  func.func @_mlp_kernel(%arg0: i32, %arg1: memref<256x14xf32, #tpu.memory_space<vmem>>, %arg2: memref<64x14xbf16, #tpu.memory_space<vmem>>, %arg3: memref<64x1xf32, #tpu.memory_space<vmem>>, %arg4: memref<64x64xbf16, #tpu.memory_space<vmem>>, %arg5: memref<64x1xf32, #tpu.memory_space<vmem>>, %arg6: memref<32x64xbf16, #tpu.memory_space<vmem>>, %arg7: memref<32x1xf32, #tpu.memory_space<vmem>>, %arg8: memref<4x32xbf16, #tpu.memory_space<vmem>>, %arg9: memref<4x1xf32, #tpu.memory_space<vmem>>, %arg10: memref<4x256xf32, #tpu.memory_space<vmem>>) attributes {dimension_semantics = [#tpu.dimension_semantics<parallel>], iteration_bounds = array<i64: 2>, scalar_prefetch = 0 : i64, scratch_operands = 0 : i64, tpu.core_type = #tpu.core_type<tc>, window_params = [{transform_indices = @transform_0, window_bounds = array<i64: 256, 14>}, {pipeline_mode = #tpu.pipeline_mode<synchronous>, transform_indices = @transform_1, window_bounds = array<i64: 64, 14>}, {pipeline_mode = #tpu.pipeline_mode<synchronous>, transform_indices = @transform_2, window_bounds = array<i64: 64, 1>}, {pipeline_mode = #tpu.pipeline_mode<synchronous>, transform_indices = @transform_3, window_bounds = array<i64: 64, 64>}, {pipeline_mode = #tpu.pipeline_mode<synchronous>, transform_indices = @transform_4, window_bounds = array<i64: 64, 1>}, {pipeline_mode = #tpu.pipeline_mode<synchronous>, transform_indices = @transform_5, window_bounds = array<i64: 32, 64>}, {pipeline_mode = #tpu.pipeline_mode<synchronous>, transform_indices = @transform_6, window_bounds = array<i64: 32, 1>}, {pipeline_mode = #tpu.pipeline_mode<synchronous>, transform_indices = @transform_7, window_bounds = array<i64: 4, 32>}, {pipeline_mode = #tpu.pipeline_mode<synchronous>, transform_indices = @transform_8, window_bounds = array<i64: 4, 1>}, {transform_indices = @transform_9, window_bounds = array<i64: 4, 256>}]} {
    %c0 = arith.constant 0 : index
    %c0_0 = arith.constant 0 : index
    %0 = vector.load %arg1[%c0, %c0_0] : memref<256x14xf32, #tpu.memory_space<vmem>>, vector<256x14xf32>
    %1 = arith.truncf %0 : vector<256x14xf32> to vector<256x14xbf16>
    %c0_1 = arith.constant 0 : index
    %c0_2 = arith.constant 0 : index
    %2 = vector.load %arg3[%c0_1, %c0_2] : memref<64x1xf32, #tpu.memory_space<vmem>>, vector<64x1xf32>
    %c0_3 = arith.constant 0 : index
    %c0_4 = arith.constant 0 : index
    %3 = vector.load %arg5[%c0_3, %c0_4] : memref<64x1xf32, #tpu.memory_space<vmem>>, vector<64x1xf32>
    %c0_5 = arith.constant 0 : index
    %c0_6 = arith.constant 0 : index
    %4 = vector.load %arg7[%c0_5, %c0_6] : memref<32x1xf32, #tpu.memory_space<vmem>>, vector<32x1xf32>
    %c0_7 = arith.constant 0 : index
    %c0_8 = arith.constant 0 : index
    %5 = vector.load %arg9[%c0_7, %c0_8] : memref<4x1xf32, #tpu.memory_space<vmem>>, vector<4x1xf32>
    %c0_9 = arith.constant 0 : index
    %c0_10 = arith.constant 0 : index
    %6 = vector.load %arg2[%c0_9, %c0_10] : memref<64x14xbf16, #tpu.memory_space<vmem>>, vector<64x14xbf16>
    %cst = arith.constant dense<0.000000e+00> : vector<64x256xf32>
    %7 = tpu.matmul %6, %1, %cst {dimension_numbers = #tpu.dot_dimension_numbers<[1], [1], [0], [0], [0, 0, 1, 0], [], []>} : vector<64x14xbf16>, vector<256x14xbf16>, vector<64x256xf32> -> vector<64x256xf32>
    %8 = vector.broadcast %2 : vector<64x1xf32> to vector<64x256xf32>
    %9 = arith.addf %7, %8 : vector<64x256xf32>
    %cst_11 = arith.constant 0.000000e+00 : f32
    %10 = vector.broadcast %cst_11 : f32 to vector<64x256xf32>
    %11 = arith.maximumf %9, %10 : vector<64x256xf32>
    %c0_12 = arith.constant 0 : index
    %c0_13 = arith.constant 0 : index
    %12 = vector.load %arg4[%c0_12, %c0_13] : memref<64x64xbf16, #tpu.memory_space<vmem>>, vector<64x64xbf16>
    %13 = arith.truncf %11 : vector<64x256xf32> to vector<64x256xbf16>
    %cst_14 = arith.constant dense<0.000000e+00> : vector<64x256xf32>
    %14 = tpu.matmul %12, %13, %cst_14 {dimension_numbers = #tpu.dot_dimension_numbers<[1], [0], [0], [1], [0, 0, 1, 1], [], []>} : vector<64x64xbf16>, vector<64x256xbf16>, vector<64x256xf32> -> vector<64x256xf32>
    %15 = vector.broadcast %3 : vector<64x1xf32> to vector<64x256xf32>
    %16 = arith.addf %14, %15 : vector<64x256xf32>
    %cst_15 = arith.constant 0.000000e+00 : f32
    %17 = vector.broadcast %cst_15 : f32 to vector<64x256xf32>
    %18 = arith.maximumf %16, %17 : vector<64x256xf32>
    %c0_16 = arith.constant 0 : index
    %c0_17 = arith.constant 0 : index
    %19 = vector.load %arg6[%c0_16, %c0_17] : memref<32x64xbf16, #tpu.memory_space<vmem>>, vector<32x64xbf16>
    %20 = arith.truncf %18 : vector<64x256xf32> to vector<64x256xbf16>
    %cst_18 = arith.constant dense<0.000000e+00> : vector<32x256xf32>
    %21 = tpu.matmul %19, %20, %cst_18 {dimension_numbers = #tpu.dot_dimension_numbers<[1], [0], [0], [1], [0, 0, 1, 1], [], []>} : vector<32x64xbf16>, vector<64x256xbf16>, vector<32x256xf32> -> vector<32x256xf32>
    %22 = vector.broadcast %4 : vector<32x1xf32> to vector<32x256xf32>
    %23 = arith.addf %21, %22 : vector<32x256xf32>
    %cst_19 = arith.constant 0.000000e+00 : f32
    %24 = vector.broadcast %cst_19 : f32 to vector<32x256xf32>
    %25 = arith.maximumf %23, %24 : vector<32x256xf32>
    %c0_20 = arith.constant 0 : index
    %c0_21 = arith.constant 0 : index
    %26 = vector.load %arg8[%c0_20, %c0_21] : memref<4x32xbf16, #tpu.memory_space<vmem>>, vector<4x32xbf16>
    %27 = arith.truncf %25 : vector<32x256xf32> to vector<32x256xbf16>
    %cst_22 = arith.constant dense<0.000000e+00> : vector<4x256xf32>
    %28 = tpu.matmul %26, %27, %cst_22 {dimension_numbers = #tpu.dot_dimension_numbers<[1], [0], [0], [1], [0, 0, 1, 1], [], []>} : vector<4x32xbf16>, vector<32x256xbf16>, vector<4x256xf32> -> vector<4x256xf32>
    %29 = vector.broadcast %5 : vector<4x1xf32> to vector<4x256xf32>
    %30 = arith.addf %28, %29 : vector<4x256xf32>
    %c0_23 = arith.constant 0 : index
    %c0_24 = arith.constant 0 : index
    %31 = vector.load %arg10[%c0_23, %c0_24] : memref<4x256xf32, #tpu.memory_space<vmem>>, vector<4x256xf32>
    tpu.vector_store %arg10[%c0_23, %c0_24], %30 {strides = array<i32>} : memref<4x256xf32, #tpu.memory_space<vmem>>, vector<4x256xf32>,
    return
  }
  func.func @transform_0(%arg0: i32) -> (i32, i32) {
    %c0_i32 = arith.constant 0 : i32
    %c0_i32_0 = arith.constant 0 : i32
    return %arg0, %c0_i32 : i32, i32
  }
  func.func @transform_1(%arg0: i32) -> (i32, i32) {
    %c0_i32 = arith.constant 0 : i32
    %c0_i32_0 = arith.constant 0 : i32
    %c0_i32_1 = arith.constant 0 : i32
    return %c0_i32, %c0_i32_0 : i32, i32
  }
  func.func @transform_2(%arg0: i32) -> (i32, i32) {
    %c0_i32 = arith.constant 0 : i32
    %c0_i32_0 = arith.constant 0 : i32
    %c0_i32_1 = arith.constant 0 : i32
    return %c0_i32, %c0_i32_0 : i32, i32
  }
  func.func @transform_3(%arg0: i32) -> (i32, i32) {
    %c0_i32 = arith.constant 0 : i32
    %c0_i32_0 = arith.constant 0 : i32
    %c0_i32_1 = arith.constant 0 : i32
    return %c0_i32, %c0_i32_0 : i32, i32
  }
  func.func @transform_4(%arg0: i32) -> (i32, i32) {
    %c0_i32 = arith.constant 0 : i32
    %c0_i32_0 = arith.constant 0 : i32
    %c0_i32_1 = arith.constant 0 : i32
    return %c0_i32, %c0_i32_0 : i32, i32
  }
  func.func @transform_5(%arg0: i32) -> (i32, i32) {
    %c0_i32 = arith.constant 0 : i32
    %c0_i32_0 = arith.constant 0 : i32
    %c0_i32_1 = arith.constant 0 : i32
    return %c0_i32, %c0_i32_0 : i32, i32
  }
  func.func @transform_6(%arg0: i32) -> (i32, i32) {
    %c0_i32 = arith.constant 0 : i32
    %c0_i32_0 = arith.constant 0 : i32
    %c0_i32_1 = arith.constant 0 : i32
    return %c0_i32, %c0_i32_0 : i32, i32
  }
  func.func @transform_7(%arg0: i32) -> (i32, i32) {
    %c0_i32 = arith.constant 0 : i32
    %c0_i32_0 = arith.constant 0 : i32
    %c0_i32_1 = arith.constant 0 : i32
    return %c0_i32, %c0_i32_0 : i32, i32
  }
  func.func @transform_8(%arg0: i32) -> (i32, i32) {
    %c0_i32 = arith.constant 0 : i32
    %c0_i32_0 = arith.constant 0 : i32
    %c0_i32_1 = arith.constant 0 : i32
    return %c0_i32, %c0_i32_0 : i32, i32
  }
  func.func @transform_9(%arg0: i32) -> (i32, i32) {
    %c0_i32 = arith.constant 0 : i32
    %c0_i32_0 = arith.constant 0 : i32
    return %c0_i32, %arg0 : i32, i32
  }
}

</mosaic_0001>

<llo_original>
// kernel: vf_approx_forward.1
$region0: #{vf_approx_forward.1}
  #allocation0 [shape = 'u32[]', space=smem, size = 0x4, offset = 0x4, fixed_abs, tag = 'smem constant byte address 0x4 - core index']
  #allocation1 [shape = 'u32[144,128]{1,0:T(1,128)}', space=vmem, size = 0x12000, scoped, tag = 'internal scratch']
  %s0 = inlined_call_operand.vmem [shape: f32[300,14], index: 0, kind: input, shape index: {}]
  %s1 = inlined_call_operand.vmem [shape: bf16[64,14], index: 1, kind: input, shape index: {}]
  %s2 = inlined_call_operand.vmem [shape: f32[64,1], index: 2, kind: input, shape index: {}]
  %s3 = inlined_call_operand.vmem [shape: bf16[64,64], index: 3, kind: input, shape index: {}]
  %s4 = inlined_call_operand.vmem [shape: f32[64,1], index: 4, kind: input, shape index: {}]
  %s5 = inlined_call_operand.vmem [shape: bf16[32,64], index: 5, kind: input, shape index: {}]
  %s6 = inlined_call_operand.vmem [shape: f32[32,1], index: 6, kind: input, shape index: {}]
  %s7 = inlined_call_operand.vmem [shape: bf16[4,32], index: 7, kind: input, shape index: {}]
  %s8 = inlined_call_operand.vmem [shape: f32[4,1], index: 8, kind: input, shape index: {}]
  %s9 = inlined_call_operand.hbm [shape: f32[4,300], index: 9, kind: output, shape index: {}]
  %s10 = sld [smem:[#allocation0]]
  $region69: #{vf_approx_forward.1} parent=0
    _
  %s12 = ssub.s32 1, %s10
  %s13 = scalar_select 0, %s12, %s10
  $region1: #{vf_approx_forward.1} parent=0
    #allocation2 [shape = 'u8[8192]{0}', space=vmem, size = 0x2000, scoped, tag = 'output window, operand 0']
    #allocation3 [shape = 's32[2]{0}', space=sflag, size = 0x8, scoped, tag = 'scoped memory for vf_approx_forward.1']
    %14 = vsyncpa [#allocation3], 0
    %s15 = scalar_lea.sflag [#allocation3], 1
    %16 = vsyncpa %s15, 0
    loop: start=0, step=1, limit=4
    $region2: #{vf_approx_forward.1} parent=1 // loop_pre_header
      _
    $region3: #{vf_approx_forward.1} parent=1 // loop_header
      %s18 = sphi 0, %s22
      %p19 = scmp.ge.s32.totalorder %s18, 4
      %s28 = sphi 0, %s30
      %s31 = sphi 0, %s28
      %s32 = sphi 0, %s31
      %s48 = sphi 0, %s32
      %s52 = sphi 0, %s52
      %s54 = sphi 0, %s52
      %s55 = sphi 0, %s54
      %s69 = sphi 0, %s55
      %s73 = sphi 0, %s73
      %s75 = sphi 0, %s73
      %s76 = sphi 0, %s75
      %s90 = sphi 0, %s76
      %s94 = sphi 0, %s94
      %s96 = sphi 0, %s94
      %s97 = sphi 0, %s96
      %s111 = sphi 0, %s97
      %s115 = sphi 0, %s115
      %s117 = sphi 0, %s115
      %s118 = sphi 0, %s117
      %s132 = sphi 0, %s118
      %s136 = sphi 0, %s136
      %s138 = sphi 0, %s136
      %s139 = sphi 0, %s138
      %s153 = sphi 0, %s139
      %s157 = sphi 0, %s157
      %s159 = sphi 0, %s157
      %s160 = sphi 0, %s159
      %s174 = sphi 0, %s160
      %s178 = sphi 0, %s178
      %s180 = sphi 0, %s178
      %s181 = sphi 0, %s180
      %s195 = sphi 0, %s181
      %s199 = sphi 0, %s199
      %s201 = sphi 0, %s199
      %s202 = sphi 0, %s201
      %s216 = sphi 0, %s202
      %s222 = sphi 0, %s224
      %s225 = sphi 0, %s222
      %s226 = sphi 0, %s225
      %s242 = sphi 0, %s226
    $region4: #{vf_approx_forward.1} parent=1 // loop_header_branch
      %21 = sbr.rel (%p19) target = $region8
    $region5: #{vf_approx_forward.1} parent=1 // loop_body
      %s23 = ssub.s32 %s18, 1
      %s24 = ssub.s32 %s18, 2
      %s25 = sadd.s32 %s18, 1
      %s26 = ssub.s32 %s18, %s25
      %p27 = scmp.eq.s32.totalorder %s26, 0
      %s29 = sadd.s32 %s28, 1
      %s30 = scalar_select %p27, %s28, %s29
      %p33 = pneg %p27
      %p34 = scmp.eq.s32.totalorder %s18, 1
      %p35 = por %p33, %p34
      %p36 = scmp.ne.s32.totalorder %s28, %s31
      %p37 = scmp.eq.s32.totalorder %s18, 0
      %p38 = por %p36, %p37
      %p39 = scmp.ne.s32.totalorder %s28, %s31
      %p40 = scmp.eq.s32.totalorder %s23, 1
      %p41 = por %p39, %p40
      %p42 = scmp.ne.s32.totalorder %s31, %s32
      %p43 = scmp.eq.s32.totalorder %s23, 0
      %p44 = por %p42, %p43
      %p45 = scmp.ne.s32.totalorder %s31, %s32
      %p46 = scmp.eq.s32.totalorder %s24, 1
      %p47 = por %p45, %p46
      %p49 = scmp.ne.s32.totalorder %s32, %s48
      %p50 = scmp.eq.s32.totalorder %s24, 0
      %p51 = por %p49, %p50
      %s53 = sadd.s32 %s52, 1
      %p56 = scmp.eq.s32.totalorder %s18, 1
      %p57 = scmp.ne.s32.totalorder %s52, %s54
      %p58 = scmp.eq.s32.totalorder %s18, 0
      %p59 = por %p57, %p58
      %p60 = scmp.ne.s32.totalorder %s52, %s54
      %p61 = scmp.eq.s32.totalorder %s23, 1
      %p62 = por %p60, %p61
      %p63 = scmp.ne.s32.totalorder %s54, %s55
      %p64 = scmp.eq.s32.totalorder %s23, 0
      %p65 = por %p63, %p64
      %p66 = scmp.ne.s32.totalorder %s54, %s55
      %p67 = scmp.eq.s32.totalorder %s24, 1
      %p68 = por %p66, %p67
      %p70 = scmp.ne.s32.totalorder %s55, %s69
      %p71 = scmp.eq.s32.totalorder %s24, 0
      %p72 = por %p70, %p71
      %s74 = sadd.s32 %s73, 1
      %p77 = scmp.eq.s32.totalorder %s18, 1
      %p78 = scmp.ne.s32.totalorder %s73, %s75
      %p79 = scmp.eq.s32.totalorder %s18, 0
      %p80 = por %p78, %p79
      %p81 = scmp.ne.s32.totalorder %s73, %s75
      %p82 = scmp.eq.s32.totalorder %s23, 1
      %p83 = por %p81, %p82
      %p84 = scmp.ne.s32.totalorder %s75, %s76
      %p85 = scmp.eq.s32.totalorder %s23, 0
      %p86 = por %p84, %p85
      %p87 = scmp.ne.s32.totalorder %s75, %s76
      %p88 = scmp.eq.s32.totalorder %s24, 1
      %p89 = por %p87, %p88
      %p91 = scmp.ne.s32.totalorder %s76, %s90
      %p92 = scmp.eq.s32.totalorder %s24, 0
      %p93 = por %p91, %p92
      %s95 = sadd.s32 %s94, 1
      %p98 = scmp.eq.s32.totalorder %s18, 1
      %p99 = scmp.ne.s32.totalorder %s94, %s96
      %p100 = scmp.eq.s32.totalorder %s18, 0
      %p101 = por %p99, %p100
      %p102 = scmp.ne.s32.totalorder %s94, %s96
      %p103 = scmp.eq.s32.totalorder %s23, 1
      %p104 = por %p102, %p103
      %p105 = scmp.ne.s32.totalorder %s96, %s97
      %p106 = scmp.eq.s32.totalorder %s23, 0
      %p107 = por %p105, %p106
      %p108 = scmp.ne.s32.totalorder %s96, %s97
      %p109 = scmp.eq.s32.totalorder %s24, 1
      %p110 = por %p108, %p109
      %p112 = scmp.ne.s32.totalorder %s97, %s111
      %p113 = scmp.eq.s32.totalorder %s24, 0
      %p114 = por %p112, %p113
      %s116 = sadd.s32 %s115, 1
      %p119 = scmp.eq.s32.totalorder %s18, 1
      %p120 = scmp.ne.s32.totalorder %s115, %s117
      %p121 = scmp.eq.s32.totalorder %s18, 0
      %p122 = por %p120, %p121
      %p123 = scmp.ne.s32.totalorder %s115, %s117
      %p124 = scmp.eq.s32.totalorder %s23, 1
      %p125 = por %p123, %p124
      %p126 = scmp.ne.s32.totalorder %s117, %s118
      %p127 = scmp.eq.s32.totalorder %s23, 0
      %p128 = por %p126, %p127
      %p129 = scmp.ne.s32.totalorder %s117, %s118
      %p130 = scmp.eq.s32.totalorder %s24, 1
      %p131 = por %p129, %p130
      %p133 = scmp.ne.s32.totalorder %s118, %s132
      %p134 = scmp.eq.s32.totalorder %s24, 0
      %p135 = por %p133, %p134
      %s137 = sadd.s32 %s136, 1
      %p140 = scmp.eq.s32.totalorder %s18, 1
      %p141 = scmp.ne.s32.totalorder %s136, %s138
      %p142 = scmp.eq.s32.totalorder %s18, 0
      %p143 = por %p141, %p142
      %p144 = scmp.ne.s32.totalorder %s136, %s138
      %p145 = scmp.eq.s32.totalorder %s23, 1
      %p146 = por %p144, %p145
      %p147 = scmp.ne.s32.totalorder %s138, %s139
      %p148 = scmp.eq.s32.totalorder %s23, 0
      %p149 = por %p147, %p148
      %p150 = scmp.ne.s32.totalorder %s138, %s139
      %p151 = scmp.eq.s32.totalorder %s24, 1
      %p152 = por %p150, %p151
      %p154 = scmp.ne.s32.totalorder %s139, %s153
      %p155 = scmp.eq.s32.totalorder %s24, 0
      %p156 = por %p154, %p155
      %s158 = sadd.s32 %s157, 1
      %p161 = scmp.eq.s32.totalorder %s18, 1
      %p162 = scmp.ne.s32.totalorder %s157, %s159
      %p163 = scmp.eq.s32.totalorder %s18, 0
      %p164 = por %p162, %p163
      %p165 = scmp.ne.s32.totalorder %s157, %s159
      %p166 = scmp.eq.s32.totalorder %s23, 1
      %p167 = por %p165, %p166
      %p168 = scmp.ne.s32.totalorder %s159, %s160
      %p169 = scmp.eq.s32.totalorder %s23, 0
      %p170 = por %p168, %p169
      %p171 = scmp.ne.s32.totalorder %s159, %s160
      %p172 = scmp.eq.s32.totalorder %s24, 1
      %p173 = por %p171, %p172
      %p175 = scmp.ne.s32.totalorder %s160, %s174
      %p176 = scmp.eq.s32.totalorder %s24, 0
      %p177 = por %p175, %p176
      %s179 = sadd.s32 %s178, 1
      %p182 = scmp.eq.s32.totalorder %s18, 1
      %p183 = scmp.ne.s32.totalorder %s178, %s180
      %p184 = scmp.eq.s32.totalorder %s18, 0
      %p185 = por %p183, %p184
      %p186 = scmp.ne.s32.totalorder %s178, %s180
      %p187 = scmp.eq.s32.totalorder %s23, 1
      %p188 = por %p186, %p187
      %p189 = scmp.ne.s32.totalorder %s180, %s181
      %p190 = scmp.eq.s32.totalorder %s23, 0
      %p191 = por %p189, %p190
      %p192 = scmp.ne.s32.totalorder %s180, %s181
      %p193 = scmp.eq.s32.totalorder %s24, 1
      %p194 = por %p192, %p193
      %p196 = scmp.ne.s32.totalorder %s181, %s195
      %p197 = scmp.eq.s32.totalorder %s24, 0
      %p198 = por %p196, %p197
      %s200 = sadd.s32 %s199, 1
      %p203 = scmp.eq.s32.totalorder %s18, 1
      %p204 = scmp.ne.s32.totalorder %s199, %s201
      %p205 = scmp.eq.s32.totalorder %s18, 0
      %p206 = por %p204, %p205
      %p207 = scmp.ne.s32.totalorder %s199, %s201
      %p208 = scmp.eq.s32.totalorder %s23, 1
      %p209 = por %p207, %p208
      %p210 = scmp.ne.s32.totalorder %s201, %s202
      %p211 = scmp.eq.s32.totalorder %s23, 0
      %p212 = por %p210, %p211
      %p213 = scmp.ne.s32.totalorder %s201, %s202
      %p214 = scmp.eq.s32.totalorder %s24, 1
      %p215 = por %p213, %p214
      %p217 = scmp.ne.s32.totalorder %s202, %s216
      %p218 = scmp.eq.s32.totalorder %s24, 0
      %p219 = por %p217, %p218
      %s220 = ssub.s32 %s18, %s25
      %p221 = scmp.eq.s32.totalorder %s220, 0
      %s223 = sadd.s32 %s222, 1
      %s224 = scalar_select %p221, %s222, %s223
      %p227 = pneg %p221
      %p228 = scmp.eq.s32.totalorder %s18, 1
      %p229 = por %p227, %p228
      %p230 = scmp.ne.s32.totalorder %s222, %s225
      %p231 = scmp.eq.s32.totalorder %s18, 0
      %p232 = por %p230, %p231
      %p233 = scmp.ne.s32.totalorder %s222, %s225
      %p234 = scmp.eq.s32.totalorder %s23, 1
      %p235 = por %p233, %p234
      %p236 = scmp.ne.s32.totalorder %s225, %s226
      %p237 = scmp.eq.s32.totalorder %s23, 0
      %p238 = por %p236, %p237
      %p239 = scmp.ne.s32.totalorder %s225, %s226
      %p240 = scmp.eq.s32.totalorder %s24, 1
      %p241 = por %p239, %p240
      %p243 = scmp.ne.s32.totalorder %s226, %s242
      %p244 = scmp.eq.s32.totalorder %s24, 0
      %p245 = por %p243, %p244
      %p246 = scmp.le.s32.totalorder 1, %s18
      %p247 = scmp.lt.s32.totalorder %s18, 3
      %p248 = pnand %p246, %p247
      %p249 = pneg %p248
      // Predicated region
      $region9: #{vf_approx_forward.1} parent=5 // pred_check
        _
      $region10: #{vf_approx_forward.1} parent=5 // pred_check_branch
        %251 = sbr.rel (%p248) target = $region12
      $region11: #{vf_approx_forward.1} parent=5 // pred_region
        %s252 = ssub.s32 %s18, 1
        // Predicated region
        $region13: #{vf_approx_forward.1} parent=11 // pred_check
          %p253 = pneg %p65
        $region14: #{vf_approx_forward.1} parent=11 // pred_check_branch
          %255 = sbr.rel (%p253) target = $region16
        $region15: #{vf_approx_forward.1} parent=11 // pred_region
          _
        $region16: #{vf_approx_forward.1} parent=11 // pred_fallthru
          _
        // Predicated region
        $region17: #{vf_approx_forward.1} parent=11 // pred_check
          %p256 = pneg %p86
        $region18: #{vf_approx_forward.1} parent=11 // pred_check_branch
          %258 = sbr.rel (%p256) target = $region20
        $region19: #{vf_approx_forward.1} parent=11 // pred_region
          _
        $region20: #{vf_approx_forward.1} parent=11 // pred_fallthru
          _
        // Predicated region
        $region21: #{vf_approx_forward.1} parent=11 // pred_check
          %p259 = pneg %p107
        $region22: #{vf_approx_forward.1} parent=11 // pred_check_branch
          %261 = sbr.rel (%p259) target = $region24
        $region23: #{vf_approx_forward.1} parent=11 // pred_region
          _
        $region24: #{vf_approx_forward.1} parent=11 // pred_fallthru
          _
        // Predicated region
        $region25: #{vf_approx_forward.1} parent=11 // pred_check
          %p262 = pneg %p128
        $region26: #{vf_approx_forward.1} parent=11 // pred_check_branch
          %264 = sbr.rel (%p262) target = $region28
        $region27: #{vf_approx_forward.1} parent=11 // pred_region
          _
        $region28: #{vf_approx_forward.1} parent=11 // pred_fallthru
          _
        // Predicated region
        $region29: #{vf_approx_forward.1} parent=11 // pred_check
          %p265 = pneg %p149
        $region30: #{vf_approx_forward.1} parent=11 // pred_check_branch
          %267 = sbr.rel (%p265) target = $region32
        $region31: #{vf_approx_forward.1} parent=11 // pred_region
          _
        $region32: #{vf_approx_forward.1} parent=11 // pred_fallthru
          _
        // Predicated region
        $region33: #{vf_approx_forward.1} parent=11 // pred_check
          %p268 = pneg %p170
        $region34: #{vf_approx_forward.1} parent=11 // pred_check_branch
          %270 = sbr.rel (%p268) target = $region36
        $region35: #{vf_approx_forward.1} parent=11 // pred_region
          _
        $region36: #{vf_approx_forward.1} parent=11 // pred_fallthru
          _
        // Predicated region
        $region37: #{vf_approx_forward.1} parent=11 // pred_check
          %p271 = pneg %p191
        $region38: #{vf_approx_forward.1} parent=11 // pred_check_branch
          %273 = sbr.rel (%p271) target = $region40
        $region39: #{vf_approx_forward.1} parent=11 // pred_region
          _
        $region40: #{vf_approx_forward.1} parent=11 // pred_fallthru
          _
        // Predicated region
        $region41: #{vf_approx_forward.1} parent=11 // pred_check
          %p274 = pneg %p212
        $region42: #{vf_approx_forward.1} parent=11 // pred_check_branch
          %276 = sbr.rel (%p274) target = $region44
        $region43: #{vf_approx_forward.1} parent=11 // pred_region
          _
        $region44: #{vf_approx_forward.1} parent=11 // pred_fallthru
          _
      $region12: #{vf_approx_forward.1} parent=5 // pred_fallthru
        _
      %p277 = scmp.lt.s32.totalorder %s18, 2
      // Predicated region
      $region45: #{vf_approx_forward.1} parent=5 // pred_check
        %p278 = pneg %p277
      $region46: #{vf_approx_forward.1} parent=5 // pred_check_branch
        %280 = sbr.rel (%p278) target = $region48
      $region47: #{vf_approx_forward.1} parent=5 // pred_region
        // Predicated region
        $region49: #{vf_approx_forward.1} parent=47 // pred_check
          %p281 = pneg %p38
        $region50: #{vf_approx_forward.1} parent=47 // pred_check_branch
          %283 = sbr.rel (%p281) target = $region52
        $region51: #{vf_approx_forward.1} parent=47 // pred_region
          %s284 = smul.u32 32, %s18
          %s285 = ssub.s32 38, %s284
          %p286 = scmp.lt.s32.totalorder %s285, 32
          %s287 = scalar_select %p286, %s285, 32
          %s288 = smul.u32 128, %s287
          %p289 = scmp.lt.s32.totalorder %s284, 37
          %s290 = scalar_select %p289, %s284, 37
          %s291 = smul.addr %s290, 8
          %s292 = scalar_lea.vmem %s0, %s291
          %s293 = smul.u32 32, %s18
          %s294 = ssub.s32 38, %s293
          %p295 = scmp.lt.s32.totalorder %s294, 32
          %s296 = scalar_select %p295, %s294, 32
          %s297 = smul.u32 128, %s296
        $region52: #{vf_approx_forward.1} parent=47 // pred_fallthru
          _
      $region48: #{vf_approx_forward.1} parent=5 // pred_fallthru
        _
      %p298 = scmp.le.s32.totalorder 1, %s18
      %p299 = scmp.lt.s32.totalorder %s18, 3
      %p300 = pnand %p298, %p299
      %p301 = pneg %p300
      // Predicated region
      $region53: #{vf_approx_forward.1} parent=5 // pred_check
        _
      $region54: #{vf_approx_forward.1} parent=5 // pred_check_branch
        %303 = sbr.rel (%p300) target = $region56
      $region55: #{vf_approx_forward.1} parent=5 // pred_region
        %s304 = ssub.s32 %s18, 1
        %s305 = smul.u32 32, %s23
        %s306 = ssub.s32 38, %s305
        %p307 = scmp.lt.s32.totalorder %s306, 32
        %s308 = scalar_select %p307, %s306, 32
        %s309 = smul.u32 128, %s308
        %p310 = scmp.lt.s32.totalorder %s305, 37
        %s311 = scalar_select %p310, %s305, 37
        %s312 = smul.addr %s311, 8
        %s313 = scalar_lea.vmem %s0, %s312
        %p314 = pneg %p44
        %p315 = pneg %p41
        %p316 = pneg %p65
        %p317 = pneg %p62
        %p318 = pneg %p86
        %p319 = pneg %p83
        %p320 = pneg %p107
        %p321 = pneg %p104
        %p322 = pneg %p128
        %p323 = pneg %p125
        %p324 = pneg %p149
        %p325 = pneg %p146
        %p326 = pneg %p170
        %p327 = pneg %p167
        %p328 = pneg %p191
        %p329 = pneg %p188
        %p330 = pneg %p212
        %p331 = pneg %p209
        %p332 = pneg %p238
        %p333 = pneg %p235
        %s334 = sand.u32 %s225, 1
        %s335 = scalar_lea.sflag [#allocation3], %s334
        %s336 = sand.u32 %s225, 1
        %s337 = smul.addr %s336, 8
        %s338 = scalar_lea.vmem [#allocation2], %s337
        %s339 = smul.u32 32, %s23
        %s340 = ssub.s32 38, %s339
        %p341 = scmp.lt.s32.totalorder %s340, 32
        %s342 = scalar_select %p341, %s340, 32
        %s343 = smul.u32 128, %s342
        %p344 = scmp.lt.s32.totalorder %s339, 37
        %s345 = scalar_select %p344, %s339, 37
        %s346 = smul.addr %s345, 8
        %s347 = scalar_lea.vmem %s0, %s346
        %s348 = smul.u32 32, %s23
        %s349 = ssub.s32 38, %s348
        %p350 = scmp.lt.s32.totalorder %s349, 32
        %s351 = scalar_select %p350, %s349, 32
        %s352 = smul.u32 128, %s351
        %s353 = smul.u32 2, %s23
        %s354 = ssub.s32 3, %s353
        %p355 = scmp.lt.s32.totalorder %s354, 2
        %s356 = scalar_select %p355, %s354, 2
        %s357 = smul.u32 64, %s356
        %v359 = vld [vmem:[%s347] sm:$0xff]
        %v360 = vld [vmem:[%s347 + $0x8] sm:$0xff]
        %v361 = vld [vmem:[%s347 + $0x10] sm:$0xff]
        %v362 = vld [vmem:[%s347 + $0x18] sm:$0xff]
        %v363 = vld [vmem:[%s347 + $0x20] sm:$0xff]
        %v364 = vld [vmem:[%s347 + $0x28] sm:$0xff]
        %v365 = vld [vmem:[%s347 + $0x30] sm:$0xff]
        %v366 = vld [vmem:[%s347 + $0x38] sm:$0xff]
        %v367 = vld [vmem:[%s347 + $0x40] sm:$0xff]
        %v368 = vld [vmem:[%s347 + $0x48] sm:$0xff]
        %v369 = vld [vmem:[%s347 + $0x50] sm:$0xff]
        %v370 = vld [vmem:[%s347 + $0x58] sm:$0xff]
        %v371 = vld [vmem:[%s347 + $0x60] sm:$0xff]
        %v372 = vld [vmem:[%s347 + $0x68] sm:$0xff]
        %v373 = vld [vmem:[%s347 + $0x70] sm:$0xff]
        %v374 = vld [vmem:[%s347 + $0x78] sm:$0xff]
        %v375 = vld [vmem:[%s347 + $0x80] sm:$0xff]
        %v376 = vld [vmem:[%s347 + $0x88] sm:$0xff]
        %v377 = vld [vmem:[%s347 + $0x90] sm:$0xff]
        %v378 = vld [vmem:[%s347 + $0x98] sm:$0xff]
        %v379 = vld [vmem:[%s347 + $0xa0] sm:$0xff]
        %v380 = vld [vmem:[%s347 + $0xa8] sm:$0xff]
        %v381 = vld [vmem:[%s347 + $0xb0] sm:$0xff]
        %v382 = vld [vmem:[%s347 + $0xb8] sm:$0xff]
        %v383 = vld [vmem:[%s347 + $0xc0] sm:$0xff]
        %v384 = vld [vmem:[%s347 + $0xc8] sm:$0xff]
        %v385 = vld [vmem:[%s347 + $0xd0] sm:$0xff]
        %v386 = vld [vmem:[%s347 + $0xd8] sm:$0xff]
        %v387 = vld [vmem:[%s347 + $0xe0] sm:$0xff]
        %v388 = vld [vmem:[%s347 + $0xe8] sm:$0xff]
        %v389 = vld [vmem:[%s347 + $0xf0] sm:$0xff]
        %v390 = vld [vmem:[%s347 + $0xf8] sm:$0xff]
        %v391 = vpack.c.bf16 %v360, %v359
        %v392 = vpack.c.bf16 %v362, %v361
        %v393 = vpack.c.bf16 %v364, %v363
        %v394 = vpack.c.bf16 %v366, %v365
        %v395 = vpack.c.bf16 %v368, %v367
        %v396 = vpack.c.bf16 %v370, %v369
        %v397 = vpack.c.bf16 %v372, %v371
        %v398 = vpack.c.bf16 %v374, %v373
        %v399 = vpack.c.bf16 %v376, %v375
        %v400 = vpack.c.bf16 %v378, %v377
        %v401 = vpack.c.bf16 %v380, %v379
        %v402 = vpack.c.bf16 %v382, %v381
        %v403 = vpack.c.bf16 %v384, %v383
        %v404 = vpack.c.bf16 %v386, %v385
        %v405 = vpack.c.bf16 %v388, %v387
        %v406 = vpack.c.bf16 %v390, %v389
        %v407 = vld [vmem:[%s2] sm:$0xff]
        %v408 = vld [vmem:[%s2 + $0x8] sm:$0xff]
        %v409 = vld [vmem:[%s2 + $0x10] sm:$0xff]
        %v410 = vld [vmem:[%s2 + $0x18] sm:$0xff]
        %v411 = vld [vmem:[%s2 + $0x20] sm:$0xff]
        %v412 = vld [vmem:[%s2 + $0x28] sm:$0xff]
        %v413 = vld [vmem:[%s2 + $0x30] sm:$0xff]
        %v414 = vld [vmem:[%s2 + $0x38] sm:$0xff]
        %v415 = vld [vmem:[%s4] sm:$0xff]
        %v416 = vld [vmem:[%s4 + $0x8] sm:$0xff]
        %v417 = vld [vmem:[%s4 + $0x10] sm:$0xff]
        %v418 = vld [vmem:[%s4 + $0x18] sm:$0xff]
        %v419 = vld [vmem:[%s4 + $0x20] sm:$0xff]
        %v420 = vld [vmem:[%s4 + $0x28] sm:$0xff]
        %v421 = vld [vmem:[%s4 + $0x30] sm:$0xff]
        %v422 = vld [vmem:[%s4 + $0x38] sm:$0xff]
        %v423 = vld [vmem:[%s6] sm:$0xff]
        %v424 = vld [vmem:[%s6 + $0x8] sm:$0xff]
        %v425 = vld [vmem:[%s6 + $0x10] sm:$0xff]
        %v426 = vld [vmem:[%s6 + $0x18] sm:$0xff]
        %v427 = vld [vmem:[%s8] sm:$0xf]
        %v428 = vld [vmem:[%s1] sm:$0xf]
        %v429 = vld [vmem:[%s1 + $0x4] sm:$0xf]
        %v430 = vld [vmem:[%s1 + $0x8] sm:$0xf]
        %v431 = vld [vmem:[%s1 + $0xc] sm:$0xf]
        %v432 = vld [vmem:[%s1 + $0x10] sm:$0xf]
        %v433 = vld [vmem:[%s1 + $0x14] sm:$0xf]
        %v434 = vld [vmem:[%s1 + $0x18] sm:$0xf]
        %v435 = vld [vmem:[%s1 + $0x1c] sm:$0xf]
        %437 = vset.pattern.permute.xlu0 0
        %438 = vperm.xlu0 %437, %v407
        %v439 = vpop.permute.xlu0 %438
        %442 = vset.pattern.permute.xlu0 0
        %443 = vperm.xlu0 %442, %v408
        %v444 = vpop.permute.xlu0 %443
        %447 = vset.pattern.permute.xlu0 0
        %448 = vperm.xlu0 %447, %v409
        %v449 = vpop.permute.xlu0 %448
        %452 = vset.pattern.permute.xlu0 0
        %453 = vperm.xlu0 %452, %v410
        %v454 = vpop.permute.xlu0 %453
        %457 = vset.pattern.permute.xlu0 0
        %458 = vperm.xlu0 %457, %v411
        %v459 = vpop.permute.xlu0 %458
        %462 = vset.pattern.permute.xlu0 0
        %463 = vperm.xlu0 %462, %v412
        %v464 = vpop.permute.xlu0 %463
        %467 = vset.pattern.permute.xlu0 0
        %468 = vperm.xlu0 %467, %v413
        %v469 = vpop.permute.xlu0 %468
        %472 = vset.pattern.permute.xlu0 0
        %473 = vperm.xlu0 %472, %v414
        %v474 = vpop.permute.xlu0 %473
        %v484 = vunpack.c.l.b16 %v428
        %v485 = vunpack.c.l.b16 %v429
        %v486 = vunpack.c.l.b16 %v430
        %v487 = vunpack.c.l.b16 %v431
        %v488 = vunpack.c.l.b16 %v432
        %v489 = vunpack.c.l.b16 %v433
        %v490 = vunpack.c.l.b16 %v434
        %v491 = vunpack.c.l.b16 %v435
        %v492 = vpack.c.b16 %v485, %v484
        %v493 = vpack.c.b16 %v487, %v486
        %v494 = vpack.c.b16 %v489, %v488
        %v495 = vpack.c.b16 %v491, %v490
        %vm496 = vcmask 113664
        %v498 = vsel %vm496, %v492, 0
        %v501 = vsel %vm496, %v493, 0
        %v504 = vsel %vm496, %v494, 0
        %v507 = vsel %vm496, %v495, 0
        %v510 = vsel %vm496, %v391, 0
        %v513 = vsel %vm496, %v392, 0
        %v516 = vsel %vm496, %v393, 0
        %v519 = vsel %vm496, %v394, 0
        %v522 = vsel %vm496, %v395, 0
        %v525 = vsel %vm496, %v396, 0
        %v528 = vsel %vm496, %v397, 0
        %v531 = vsel %vm496, %v398, 0
        %v534 = vsel %vm496, %v399, 0
        %v537 = vsel %vm496, %v400, 0
        %v540 = vsel %vm496, %v401, 0
        %v543 = vsel %vm496, %v402, 0
        %v546 = vsel %vm496, %v403, 0
        %v549 = vsel %vm496, %v404, 0
        %v552 = vsel %vm496, %v405, 0
        %v555 = vsel %vm496, %v406, 0
        %557 = vmatprep.subr.bf16.mxu0 0
        %558 = vmatpush1.bf16.xpose.msra.mxu0 %v510
        %559 = vmatprep.subr.bf16.mxu0 0
        %560 = vmatpush1.bf16.xpose.msra.mxu0 %v513
        %561 = vmatprep.subr.bf16.mxu0 0
        %562 = vmatpush1.bf16.xpose.msra.mxu0 %v516
        %563 = vmatprep.subr.bf16.mxu0 0
        %564 = vmatpush1.bf16.xpose.msra.mxu0 %v519
        %565 = vmatprep.subr.bf16.mxu0 0
        %566 = vmatpush1.bf16.xpose.msra.mxu0 %v522
        %567 = vmatprep.subr.bf16.mxu0 0
        %568 = vmatpush1.bf16.xpose.msra.mxu0 %v525
        %569 = vmatprep.subr.bf16.mxu0 0
        %570 = vmatpush1.bf16.xpose.msra.mxu0 %v528
        %571 = vmatprep.subr.bf16.mxu0 0
        %572 = vmatpush1.bf16.xpose.msra.mxu0 %v531
        %573 = vmatprep.subr.bf16.mxu0 0
        %574 = vmatpush1.bf16.xpose.msra.mxu0 %v534
        %575 = vmatprep.subr.bf16.mxu0 0
        %576 = vmatpush1.bf16.xpose.msra.mxu0 %v537
        %577 = vmatprep.subr.bf16.mxu0 0
        %578 = vmatpush1.bf16.xpose.msra.mxu0 %v540
        %579 = vmatprep.subr.bf16.mxu0 0
        %580 = vmatpush1.bf16.xpose.msra.mxu0 %v543
        %581 = vmatprep.subr.bf16.mxu0 0
        %582 = vmatpush1.bf16.xpose.msra.mxu0 %v546
        %583 = vmatprep.subr.bf16.mxu0 0
        %584 = vmatpush1.bf16.xpose.msra.mxu0 %v549
        %585 = vmatprep.subr.bf16.mxu0 0
        %586 = vmatpush1.bf16.xpose.msra.mxu0 %v552
        %587 = vmatprep.subr.bf16.mxu0 0
        %588 = vmatpush1.bf16.xpose.msra.mxu0 %v555
        %589 = vmatprep.mubr.bf16.mxu0 0
        %590 = vmatmul.mubr.bf16.gmra.mrb[0].mxu0 %v498
        %v591 = vpop.f32.mrb[0].mxu0
        %v592 = vadd.f32 %v439, %v591
        %v593 = vpop.f32.mrb[0].mxu0
        %v594 = vadd.f32 %v439, %v593
        %v595 = vpop.f32.mrb[0].mxu0
        %v596 = vadd.f32 %v444, %v595
        %v597 = vpop.f32.mrb[0].mxu0
        %v598 = vadd.f32 %v444, %v597
        %599 = vmatprep.mubr.bf16.mxu0 0
        %600 = vmatmul.mubr.bf16.gmra.mrb[0].mxu0 %v501
        %v601 = vpop.f32.mrb[0].mxu0
        %v602 = vadd.f32 %v449, %v601
        %v603 = vpop.f32.mrb[0].mxu0
        %v604 = vadd.f32 %v449, %v603
        %v605 = vpop.f32.mrb[0].mxu0
        %v606 = vadd.f32 %v454, %v605
        %v607 = vpop.f32.mrb[0].mxu0
        %v608 = vadd.f32 %v454, %v607
        %609 = vmatprep.mubr.bf16.mxu0 0
        %610 = vmatmul.mubr.bf16.gmra.mrb[0].mxu0 %v504
        %v611 = vpop.f32.mrb[0].mxu0
        %v612 = vadd.f32 %v459, %v611
        %v613 = vpop.f32.mrb[0].mxu0
        %v614 = vadd.f32 %v459, %v613
        %v615 = vpop.f32.mrb[0].mxu0
        %v616 = vadd.f32 %v464, %v615
        %v617 = vpop.f32.mrb[0].mxu0
        %v618 = vadd.f32 %v464, %v617
        %619 = vmatprep.mubr.bf16.mxu0 0
        %620 = vmatmul.mubr.bf16.gmra.mrb[0].mxu0 %v507
        %v621 = vpop.f32.mrb[0].mxu0
        %v622 = vadd.f32 %v469, %v621
        %v623 = vpop.f32.mrb[0].mxu0
        %v624 = vadd.f32 %v469, %v623
        %v625 = vpop.f32.mrb[0].mxu0
        %v626 = vadd.f32 %v474, %v625
        %v627 = vpop.f32.mrb[0].mxu0
        %v628 = vadd.f32 %v474, %v627
        %629 = vdwg.mxu0
        %v630 = vmax.f32 %v592, 0.0
        %v631 = vmax.f32 %v594, 0.0
        %v632 = vmax.f32 %v596, 0.0
        %v633 = vmax.f32 %v598, 0.0
        %v634 = vmax.f32 %v602, 0.0
        %v635 = vmax.f32 %v604, 0.0
        %v636 = vmax.f32 %v606, 0.0
        %v637 = vmax.f32 %v608, 0.0
        %v638 = vmax.f32 %v612, 0.0
        %v639 = vmax.f32 %v614, 0.0
        %v640 = vmax.f32 %v616, 0.0
        %v641 = vmax.f32 %v618, 0.0
        %v642 = vmax.f32 %v622, 0.0
        %v643 = vmax.f32 %v624, 0.0
        %v644 = vmax.f32 %v626, 0.0
        %v645 = vmax.f32 %v628, 0.0
        %v646 = vld [vmem:[%s3] sm:$0xf]
        %v647 = vld [vmem:[%s3 + $0x4] sm:$0xf]
        %v648 = vld [vmem:[%s3 + $0x8] sm:$0xf]
        %v649 = vld [vmem:[%s3 + $0xc] sm:$0xf]
        %v650 = vld [vmem:[%s3 + $0x10] sm:$0xf]
        %v651 = vld [vmem:[%s3 + $0x14] sm:$0xf]
        %v652 = vld [vmem:[%s3 + $0x18] sm:$0xf]
        %v653 = vld [vmem:[%s3 + $0x1c] sm:$0xf]
        %v654 = vpack.c.bf16 %v632, %v630
        %v655 = vpack.c.bf16 %v633, %v631
        %v656 = vpack.c.bf16 %v636, %v634
        %v657 = vpack.c.bf16 %v637, %v635
        %v658 = vpack.c.bf16 %v640, %v638
        %v659 = vpack.c.bf16 %v641, %v639
        %v660 = vpack.c.bf16 %v644, %v642
        %v661 = vpack.c.bf16 %v645, %v643
        %663 = vset.pattern.permute.xlu0 0
        %664 = vperm.xlu0 %663, %v415
        %v665 = vpop.permute.xlu0 %664
        %668 = vset.pattern.permute.xlu0 0
        %669 = vperm.xlu0 %668, %v416
        %v670 = vpop.permute.xlu0 %669
        %673 = vset.pattern.permute.xlu0 0
        %674 = vperm.xlu0 %673, %v417
        %v675 = vpop.permute.xlu0 %674
        %678 = vset.pattern.permute.xlu0 0
        %679 = vperm.xlu0 %678, %v418
        %v680 = vpop.permute.xlu0 %679
        %683 = vset.pattern.permute.xlu0 0
        %684 = vperm.xlu0 %683, %v419
        %v685 = vpop.permute.xlu0 %684
        %688 = vset.pattern.permute.xlu0 0
        %689 = vperm.xlu0 %688, %v420
        %v690 = vpop.permute.xlu0 %689
        %693 = vset.pattern.permute.xlu0 0
        %694 = vperm.xlu0 %693, %v421
        %v695 = vpop.permute.xlu0 %694
        %698 = vset.pattern.permute.xlu0 0
        %699 = vperm.xlu0 %698, %v422
        %v700 = vpop.permute.xlu0 %699
        %v710 = vunpack.c.l.b16 %v646
        %v711 = vunpack.c.l.b16 %v647
        %v712 = vunpack.c.l.b16 %v648
        %v713 = vunpack.c.l.b16 %v649
        %v714 = vunpack.c.l.b16 %v650
        %v715 = vunpack.c.l.b16 %v651
        %v716 = vunpack.c.l.b16 %v652
        %v717 = vunpack.c.l.b16 %v653
        %v718 = vpack.c.b16 %v711, %v710
        %v719 = vpack.c.b16 %v713, %v712
        %v720 = vpack.c.b16 %v715, %v714
        %v721 = vpack.c.b16 %v717, %v716
        %vm722 = vcmask 523264
        %v724 = vsel %vm722, %v718, 0
        %v727 = vsel %vm722, %v719, 0
        %v730 = vsel %vm722, %v720, 0
        %v733 = vsel %vm722, %v721, 0
        %735 = vmatprep.subr.bf16.mxu0 %v655
        %736 = vmatpush1.bf16.msra.mxu0 %v654
        %737 = vmatprep.subr.bf16.mxu0 %v657
        %738 = vmatpush1.bf16.msra.mxu0 %v656
        %739 = vmatprep.subr.bf16.mxu0 %v659
        %740 = vmatpush1.bf16.msra.mxu0 %v658
        %741 = vmatprep.subr.bf16.mxu0 %v661
        %742 = vmatpush1.bf16.msra.mxu0 %v660
        %743 = vmatprep.subr.bf16.mxu0 0
        %744 = vmatpush1.bf16.msra.mxu0 0
        %745 = vmatprep.subr.bf16.mxu0 0
        %746 = vmatpush1.bf16.msra.mxu0 0
        %747 = vmatprep.subr.bf16.mxu0 0
        %748 = vmatpush1.bf16.msra.mxu0 0
        %749 = vmatprep.subr.bf16.mxu0 0
        %750 = vmatpush1.bf16.msra.mxu0 0
        %751 = vmatprep.subr.bf16.mxu0 0
        %752 = vmatpush1.bf16.msra.mxu0 0
        %753 = vmatprep.subr.bf16.mxu0 0
        %754 = vmatpush1.bf16.msra.mxu0 0
        %755 = vmatprep.subr.bf16.mxu0 0
        %756 = vmatpush1.bf16.msra.mxu0 0
        %757 = vmatprep.subr.bf16.mxu0 0
        %758 = vmatpush1.bf16.msra.mxu0 0
        %759 = vmatprep.subr.bf16.mxu0 0
        %760 = vmatpush1.bf16.msra.mxu0 0
        %761 = vmatprep.subr.bf16.mxu0 0
        %762 = vmatpush1.bf16.msra.mxu0 0
        %763 = vmatprep.subr.bf16.mxu0 0
        %764 = vmatpush1.bf16.msra.mxu0 0
        %765 = vmatprep.subr.bf16.mxu0 0
        %766 = vmatpush1.bf16.msra.mxu0 0
        %767 = vmatprep.mubr.bf16.mxu0 0
        %768 = vmatmul.mubr.bf16.gmra.mrb[0].mxu0 %v724
        %v769 = vpop.f32.mrb[0].mxu0
        %v770 = vadd.f32 %v665, %v769
        %v771 = vpop.f32.mrb[0].mxu0
        %v772 = vadd.f32 %v665, %v771
        %v773 = vpop.f32.mrb[0].mxu0
        %v774 = vadd.f32 %v670, %v773
        %v775 = vpop.f32.mrb[0].mxu0
        %v776 = vadd.f32 %v670, %v775
        %777 = vmatprep.mubr.bf16.mxu0 0
        %778 = vmatmul.mubr.bf16.gmra.mrb[0].mxu0 %v727
        %v779 = vpop.f32.mrb[0].mxu0
        %v780 = vadd.f32 %v675, %v779
        %v781 = vpop.f32.mrb[0].mxu0
        %v782 = vadd.f32 %v675, %v781
        %v783 = vpop.f32.mrb[0].mxu0
        %v784 = vadd.f32 %v680, %v783
        %v785 = vpop.f32.mrb[0].mxu0
        %v786 = vadd.f32 %v680, %v785
        %787 = vmatprep.mubr.bf16.mxu0 0
        %788 = vmatmul.mubr.bf16.gmra.mrb[0].mxu0 %v730
        %v789 = vpop.f32.mrb[0].mxu0
        %v790 = vadd.f32 %v685, %v789
        %v791 = vpop.f32.mrb[0].mxu0
        %v792 = vadd.f32 %v685, %v791
        %v793 = vpop.f32.mrb[0].mxu0
        %v794 = vadd.f32 %v690, %v793
        %v795 = vpop.f32.mrb[0].mxu0
        %v796 = vadd.f32 %v690, %v795
        %797 = vmatprep.mubr.bf16.mxu0 0
        %798 = vmatmul.mubr.bf16.gmra.mrb[0].mxu0 %v733
        %v799 = vpop.f32.mrb[0].mxu0
        %v800 = vadd.f32 %v695, %v799
        %v801 = vpop.f32.mrb[0].mxu0
        %v802 = vadd.f32 %v695, %v801
        %v803 = vpop.f32.mrb[0].mxu0
        %v804 = vadd.f32 %v700, %v803
        %v805 = vpop.f32.mrb[0].mxu0
        %v806 = vadd.f32 %v700, %v805
        %807 = vdwg.mxu0
        %v808 = vmax.f32 %v770, 0.0
        %v809 = vmax.f32 %v772, 0.0
        %v810 = vmax.f32 %v774, 0.0
        %v811 = vmax.f32 %v776, 0.0
        %v812 = vmax.f32 %v780, 0.0
        %v813 = vmax.f32 %v782, 0.0
        %v814 = vmax.f32 %v784, 0.0
        %v815 = vmax.f32 %v786, 0.0
        %v816 = vmax.f32 %v790, 0.0
        %v817 = vmax.f32 %v792, 0.0
        %v818 = vmax.f32 %v794, 0.0
        %v819 = vmax.f32 %v796, 0.0
        %v820 = vmax.f32 %v800, 0.0
        %v821 = vmax.f32 %v802, 0.0
        %v822 = vmax.f32 %v804, 0.0
        %v823 = vmax.f32 %v806, 0.0
        %v824 = vld [vmem:[%s5] sm:$0xf]
        %v825 = vld [vmem:[%s5 + $0x4] sm:$0xf]
        %v826 = vld [vmem:[%s5 + $0x8] sm:$0xf]
        %v827 = vld [vmem:[%s5 + $0xc] sm:$0xf]
        %v828 = vpack.c.bf16 %v810, %v808
        %v829 = vpack.c.bf16 %v811, %v809
        %v830 = vpack.c.bf16 %v814, %v812
        %v831 = vpack.c.bf16 %v815, %v813
        %v832 = vpack.c.bf16 %v818, %v816
        %v833 = vpack.c.bf16 %v819, %v817
        %v834 = vpack.c.bf16 %v822, %v820
        %v835 = vpack.c.bf16 %v823, %v821
        %837 = vset.pattern.permute.xlu0 0
        %838 = vperm.xlu0 %837, %v423
        %v839 = vpop.permute.xlu0 %838
        %842 = vset.pattern.permute.xlu0 0
        %843 = vperm.xlu0 %842, %v424
        %v844 = vpop.permute.xlu0 %843
        %847 = vset.pattern.permute.xlu0 0
        %848 = vperm.xlu0 %847, %v425
        %v849 = vpop.permute.xlu0 %848
        %852 = vset.pattern.permute.xlu0 0
        %853 = vperm.xlu0 %852, %v426
        %v854 = vpop.permute.xlu0 %853
        %v860 = vunpack.c.l.b16 %v824
        %v861 = vunpack.c.l.b16 %v825
        %v862 = vunpack.c.l.b16 %v826
        %v863 = vunpack.c.l.b16 %v827
        %v864 = vpack.c.b16 %v861, %v860
        %v865 = vpack.c.b16 %v863, %v862
        %v867 = vsel %vm722, %v864, 0
        %v870 = vsel %vm722, %v865, 0
        %872 = vmatprep.subr.bf16.mxu0 %v829
        %873 = vmatpush1.bf16.msra.mxu0 %v828
        %874 = vmatprep.subr.bf16.mxu0 %v831
        %875 = vmatpush1.bf16.msra.mxu0 %v830
        %876 = vmatprep.subr.bf16.mxu0 %v833
        %877 = vmatpush1.bf16.msra.mxu0 %v832
        %878 = vmatprep.subr.bf16.mxu0 %v835
        %879 = vmatpush1.bf16.msra.mxu0 %v834
        %880 = vmatprep.subr.bf16.mxu0 0
        %881 = vmatpush1.bf16.msra.mxu0 0
        %882 = vmatprep.subr.bf16.mxu0 0
        %883 = vmatpush1.bf16.msra.mxu0 0
        %884 = vmatprep.subr.bf16.mxu0 0
        %885 = vmatpush1.bf16.msra.mxu0 0
        %886 = vmatprep.subr.bf16.mxu0 0
        %887 = vmatpush1.bf16.msra.mxu0 0
        %888 = vmatprep.subr.bf16.mxu0 0
        %889 = vmatpush1.bf16.msra.mxu0 0
        %890 = vmatprep.subr.bf16.mxu0 0
        %891 = vmatpush1.bf16.msra.mxu0 0
        %892 = vmatprep.subr.bf16.mxu0 0
        %893 = vmatpush1.bf16.msra.mxu0 0
        %894 = vmatprep.subr.bf16.mxu0 0
        %895 = vmatpush1.bf16.msra.mxu0 0
        %896 = vmatprep.subr.bf16.mxu0 0
        %897 = vmatpush1.bf16.msra.mxu0 0
        %898 = vmatprep.subr.bf16.mxu0 0
        %899 = vmatpush1.bf16.msra.mxu0 0
        %900 = vmatprep.subr.bf16.mxu0 0
        %901 = vmatpush1.bf16.msra.mxu0 0
        %902 = vmatprep.subr.bf16.mxu0 0
        %903 = vmatpush1.bf16.msra.mxu0 0
        %904 = vmatprep.mubr.bf16.mxu0 0
        %905 = vmatmul.mubr.bf16.gmra.mrb[0].mxu0 %v867
        %v906 = vpop.f32.mrb[0].mxu0
        %v907 = vadd.f32 %v839, %v906
        %v908 = vpop.f32.mrb[0].mxu0
        %v909 = vadd.f32 %v839, %v908
        %v910 = vpop.f32.mrb[0].mxu0
        %v911 = vadd.f32 %v844, %v910
        %v912 = vpop.f32.mrb[0].mxu0
        %v913 = vadd.f32 %v844, %v912
        %914 = vmatprep.mubr.bf16.mxu0 0
        %915 = vmatmul.mubr.bf16.gmra.mrb[0].mxu0 %v870
        %v916 = vpop.f32.mrb[0].mxu0
        %v917 = vadd.f32 %v849, %v916
        %v918 = vpop.f32.mrb[0].mxu0
        %v919 = vadd.f32 %v849, %v918
        %v920 = vpop.f32.mrb[0].mxu0
        %v921 = vadd.f32 %v854, %v920
        %v922 = vpop.f32.mrb[0].mxu0
        %v923 = vadd.f32 %v854, %v922
        %924 = vdwg.mxu0
        %v925 = vmax.f32 %v907, 0.0
        %v926 = vmax.f32 %v909, 0.0
        %v927 = vmax.f32 %v911, 0.0
        %v928 = vmax.f32 %v913, 0.0
        %v929 = vmax.f32 %v917, 0.0
        %v930 = vmax.f32 %v919, 0.0
        %v931 = vmax.f32 %v921, 0.0
        %v932 = vmax.f32 %v923, 0.0
        %v933 = vld [vmem:[%s7] sm:$0x3]
        %v934 = vpack.c.bf16 %v927, %v925
        %v935 = vpack.c.bf16 %v928, %v926
        %v936 = vpack.c.bf16 %v931, %v929
        %v937 = vpack.c.bf16 %v932, %v930
        %939 = vset.pattern.permute.xlu0 0
        %940 = vperm.xlu0 %939, %v427
        %v941 = vpop.permute.xlu0 %940
        %vm943 = vcmask 261120
        %v945 = vsel %vm943, %v933, 0
        %947 = vmatprep.subr.bf16.mxu0 %v935
        %948 = vmatpush1.bf16.msra.mxu0 %v934
        %949 = vmatprep.subr.bf16.mxu0 %v937
        %950 = vmatpush1.bf16.msra.mxu0 %v936
        %951 = vmatprep.subr.bf16.mxu0 0
        %952 = vmatpush1.bf16.msra.mxu0 0
        %953 = vmatprep.subr.bf16.mxu0 0
        %954 = vmatpush1.bf16.msra.mxu0 0
        %955 = vmatprep.subr.bf16.mxu0 0
        %956 = vmatpush1.bf16.msra.mxu0 0
        %957 = vmatprep.subr.bf16.mxu0 0
        %958 = vmatpush1.bf16.msra.mxu0 0
        %959 = vmatprep.subr.bf16.mxu0 0
        %960 = vmatpush1.bf16.msra.mxu0 0
        %961 = vmatprep.subr.bf16.mxu0 0
        %962 = vmatpush1.bf16.msra.mxu0 0
        %963 = vmatprep.subr.bf16.mxu0 0
        %964 = vmatpush1.bf16.msra.mxu0 0
        %965 = vmatprep.subr.bf16.mxu0 0
        %966 = vmatpush1.bf16.msra.mxu0 0
        %967 = vmatprep.subr.bf16.mxu0 0
        %968 = vmatpush1.bf16.msra.mxu0 0
        %969 = vmatprep.subr.bf16.mxu0 0
        %970 = vmatpush1.bf16.msra.mxu0 0
        %971 = vmatprep.subr.bf16.mxu0 0
        %972 = vmatpush1.bf16.msra.mxu0 0
        %973 = vmatprep.subr.bf16.mxu0 0
        %974 = vmatpush1.bf16.msra.mxu0 0
        %975 = vmatprep.subr.bf16.mxu0 0
        %976 = vmatpush1.bf16.msra.mxu0 0
        %977 = vmatprep.subr.bf16.mxu0 0
        %978 = vmatpush1.bf16.msra.mxu0 0
        %979 = vmatprep.mubr.bf16.mxu0 0
        %980 = vmatmul.mubr.bf16.gmra.mrb[0].mxu0 %v945
        %v981 = vpop.f32.mrb[0].mxu0
        %v982 = vadd.f32 %v941, %v981
        %v983 = vpop.f32.mrb[0].mxu0
        %v984 = vadd.f32 %v941, %v983
        %v985 = vpop.f32.mrb[0].mxu0
        %v986 = vpop.f32.mrb[0].mxu0
        %987 = vdwg.mxu0
        %v990 = vcombine.low %v982, %v984
        %992 = vst [vmem:[%s338] sm:$0xff] %v990
        %s993 = sand.u32 %s225, 1
        %s994 = scalar_lea.sflag [#allocation3], %s993
        %s995 = sand.u32 %s225, 1
        %s996 = smul.addr %s995, 8
        %s997 = scalar_lea.vmem [#allocation2], %s996
        // Predicated region
        $region57: #{vf_approx_forward.1} parent=55 // pred_check
          %p998 = pneg %p235
        $region58: #{vf_approx_forward.1} parent=55 // pred_check_branch
          %1000 = sbr.rel (%p998) target = $region60
        $region59: #{vf_approx_forward.1} parent=55 // pred_region
          %s1001 = smul.u32 2, %s23
          %s1002 = ssub.s32 3, %s1001
          %p1003 = scmp.lt.s32.totalorder %s1002, 2
          %s1004 = scalar_select %p1003, %s1002, 2
          %s1005 = smul.u32 64, %s1004
          %s1007 = ssub.s32 128, %s1005
          %1008 = vsyncadd %s994, %s1007
          %p1009 = scmp.ne.s32.totalorder 0, %s1005
          %s1010 = smul.addr %s1001, 64
          %s1011 = scalar_lea.hbm %s9, %s1010
          %s1012 = smul.u32 %s1004, 4
          %s1013 = sshll.u32 %s1012, 4
          %s1014 = sshll.u32 %s997, 4
          %s1015 = int_to_ptr.vmem [resolvable:$true] %s1014
          %1017 = dma.vmem_to_hbm [thread:$0]  (%p1009), %s1015, %s1013, %s1011, %s994
        $region60: #{vf_approx_forward.1} parent=55 // pred_fallthru
          _
      $region56: #{vf_approx_forward.1} parent=5 // pred_fallthru
        _
      %p1018 = scmp.le.s32.totalorder 2, %s18
      // Predicated region
      $region61: #{vf_approx_forward.1} parent=5 // pred_check
        %p1019 = pneg %p1018
      $region62: #{vf_approx_forward.1} parent=5 // pred_check_branch
        %1021 = sbr.rel (%p1019) target = $region64
      $region63: #{vf_approx_forward.1} parent=5 // pred_region
        %s1022 = ssub.s32 %s18, 2
        // Predicated region
        $region65: #{vf_approx_forward.1} parent=63 // pred_check
          %p1023 = pneg %p241
        $region66: #{vf_approx_forward.1} parent=63 // pred_check_branch
          %1025 = sbr.rel (%p1023) target = $region68
        $region67: #{vf_approx_forward.1} parent=63 // pred_region
          %s1026 = sand.u32 %s226, 1
          %s1027 = scalar_lea.sflag [#allocation3], %s1026
          %s1028 = sand.u32 %s226, 1
          %s1029 = smul.addr %s1028, 8
          %s1030 = scalar_lea.vmem [#allocation2], %s1029
          %1031 = dma.done %s1027, 128
        $region68: #{vf_approx_forward.1} parent=63 // pred_fallthru
          _
      $region64: #{vf_approx_forward.1} parent=5 // pred_fallthru
        _
    $region6: #{vf_approx_forward.1} parent=1 // loop_footer
      %s22 = sadd.s32 1, %s18
    $region7: #{vf_approx_forward.1} parent=1 // loop_footer_branch
      %17 = sbr.rel target = $region3
    $region8: #{vf_approx_forward.1} parent=1 // loop_exit
      _
    %1032 = vsyncpa [#allocation3], 1
    %s1033 = scalar_lea.sflag [#allocation3], 1
    %1034 = vsyncpa %s1033, 1

</llo_original>
